<compile_context>
chip_gen: v7x
topology: tpu7x:2x2x1
jax: 0.10.0
libtpu: 0.0.40
codegen_flags: <defaults>
</compile_context>

<pallas_src>
import math

import jax
import jax.numpy as jnp
from jax.experimental import pallas as pl
from jax.experimental.pallas import tpu as pltpu


# ----------------------------- Pallas kernel ------------------------------ #
def _ac_feedback_kernel(x_ref, w_ref, soff_ref, o_ref):
    # (b_tile, D) @ (D, nAC) -> (b_tile, nAC) on the MXU, f32 accumulation.
    s = jnp.dot(x_ref[...], w_ref[...], preferred_element_type=jnp.float32)
    # TODO(synk): `precomputed_sigmoid` is not defined in the reference source;
    # assuming the standard logistic sigmoid(slope * (s - offset)).  The slope
    # is pre-folded into w_ref, so z = slope*s - slope*offset.
    z = s - soff_ref[...]
    # Exact divide (the approx EUP reciprocal exceeded the 1e-3 accuracy
    # budget; this kernel is memory-bound so exact costs nothing).
    o_ref[...] = 1.0 / (1.0 + jnp.exp(-z))


# --------------------- Static precompute (plain-JAX glue) ------------------ #
def fuse_ac_params(bc_ac_weight, ac_kernel, ac_sigmoid_offset,
                   ac_sigmoid_slope, T, *, in_dtype=jnp.float32):
    """Fold temporal filter, left-zero-pad (T <= K) and sigmoid slope into the
    BC->AC weights.  Returns (w_t: (D, nAC) in in_dtype, slope_off: (1, nAC) f32)."""
    nAC, nBC = bc_ac_weight.shape
    K = ac_kernel.shape[1]
    assert T <= K, "time window longer than the AC kernel is not supported"
    # Left-padding (W@x) with K-T zeros means only the last T taps of
    # ac_kernel ever touch real data.
    k_eff = ac_kernel[:, K - T:].astype(jnp.float32)                 # (nAC, T)
    slope = ac_sigmoid_slope.reshape(nAC, 1).astype(jnp.float32)     # (nAC, 1)
    fused = (bc_ac_weight[:, :, None].astype(jnp.float32)
             * k_eff[:, None, :]).reshape(nAC, nBC * T)              # (nAC, D)
    w_t = (slope * fused).T.astype(in_dtype)                         # (D, nAC)
    slope_off = (ac_sigmoid_slope.astype(jnp.float32)
                 * ac_sigmoid_offset.astype(jnp.float32)).reshape(1, nAC)
    return w_t, slope_off


def _pick_b_tile(B, D, itemsize, *, max_tile=2048, target_splits=4):
    """Tile rows of x.  Big enough to amortize per-step overhead, small enough
    to (a) keep >= target_splits grid steps when B allows (v7x megacore +
    pipelining) and (b) keep the double-buffered x block <= ~8 MiB, within the
    default scoped VMEM of every generation (v5e 16 MiB, v7x 32 MiB)."""
    vmem_cap_rows = (8 * 1024 * 1024) // (2 * D * itemsize)
    vmem_cap_rows = max(128, (vmem_cap_rows // 128) * 128)
    tile = -(-B // target_splits)          # cdiv(B, target_splits)
    tile = -(-tile // 128) * 128           # round up to a multiple of 128
    return int(max(128, min(tile, max_tile, vmem_cap_rows)))


# ------------------------------- Wrappers ---------------------------------- #
def ac_feedback_forward_batched(x_batch, bc_ac_weight, ac_kernel,
                                ac_sigmoid_offset, ac_sigmoid_slope,
                                *, b_tile=None):
    """x_batch: (B, nBC, T) with T <= K.  Returns (B, nAC) float32; row b equals
    the original single-step forward applied to x_batch[b]."""
    B, nBC, T = x_batch.shape
    nAC = bc_ac_weight.shape[0]
    D = nBC * T

    # Accept bf16 inputs as-is; do NOT cast in the wrapper (extra HBM pass).
    if x_batch.dtype == jnp.bfloat16:
        in_dtype, itemsize = jnp.bfloat16, 2
    else:
        in_dtype, itemsize = jnp.float32, 4

    x_flat = x_batch.reshape(B, D)
    if x_flat.dtype != in_dtype:
        x_flat = x_flat.astype(in_dtype)

    w_t, slope_off = fuse_ac_params(bc_ac_weight, ac_kernel, ac_sigmoid_offset,
                                    ac_sigmoid_slope, T, in_dtype=in_dtype)

    if b_tile is None:
        b_tile = _pick_b_tile(B, D, itemsize)
    grid = (int(pl.cdiv(B, b_tile)),)

    out = pl.pallas_call(
        _ac_feedback_kernel,
        out_shape=jax.ShapeDtypeStruct((B, nAC), jnp.float32),
        grid=grid,
        in_specs=[
            pl.BlockSpec((b_tile, D), lambda i: (i, 0)),   # x tile (streamed)
            pl.BlockSpec((D, nAC), lambda i: (0, 0)),      # fused weights (resident)
            pl.BlockSpec((1, nAC), lambda i: (0, 0)),      # slope * offset (resident)
        ],
        out_specs=pl.BlockSpec((b_tile, nAC), lambda i: (i, 0)),
        compiler_params=pltpu.CompilerParams(
            dimension_semantics=("parallel",)),
    )(x_flat, w_t, slope_off)
    return out                                              # (B, nAC)


def ac_feedback_forward(x, bc_ac_weight, ac_kernel, ac_sigmoid_offset,
                        ac_sigmoid_slope):
    """Single-timestep forward matching the PyTorch module: x (nBC, T) -> (nAC,).

    B=1 is launch-overhead dominated and would DMA a full tile of padding
    through pallas_call, so it gets a plain-JAX path with identical math."""
    nBC, T = x.shape
    K = ac_kernel.shape[1]
    h = bc_ac_weight.astype(jnp.float32) @ x.astype(jnp.float32)     # (nAC, T)
    h = jnp.pad(h, ((0, 0), (K - T, 0)))                             # left-pad
    s = jnp.sum(ac_kernel.astype(jnp.float32) * h, axis=1)           # (nAC,)
    return 1.0 / (1.0 + jnp.exp(-ac_sigmoid_slope * (s - ac_sigmoid_offset)))


# --------------------- Parameter setup (plain-JAX glue) -------------------- #
def make_kernel_time(input_frequency=64):
    # torch.arange(0.8, 0, step=-1/input_frequency)[None, :]
    step = 1.0 / input_frequency
    n = math.ceil(0.8 / step)
    t = 0.8 - step * jnp.arange(n, dtype=jnp.float32)
    return t[None, :]  # (1, K)


def compute_ac_kernel(log_tau_rise, log_tau_decay, kernel_time):
    """Double-exponential temporal kernel, L2-normalized per AC. -> (nAC, K)."""
    tau_rise = jnp.exp(log_tau_rise)[:, None]    # (nAC, 1)
    tau_decay = jnp.exp(log_tau_decay)[:, None]  # (nAC, 1)
    kern = jnp.exp(-kernel_time / tau_decay) - jnp.exp(
        -(tau_decay + tau_rise) / (tau_decay * tau_rise) * kernel_time)
    kern = kern / jnp.linalg.norm(kern, axis=1, keepdims=True)
    return kern


# --------------------------------- Main ------------------------------------ #
if __name__ == "__main__":
    key = jax.random.PRNGKey(0)
    nAC, nBC = 4, 14        # 14 BC inputs as described in the module docstring
    input_frequency = 64

    kernel_time = make_kernel_time(input_frequency)   # (1, K)
    K = kernel_time.shape[1]
    T = 40                  # T < K exercises the (fused) left-pad path
    B = 200                 # batch of timesteps -> 2 grid steps (ragged last)

    k_w, k_tr, k_td, k_sl, k_off, k_x = jax.random.split(key, 6)

    # Deterministic synthetic parameters (log-space, as in WeightInitialization)
    log_bc_ac_weight = 0.1 * jax.random.normal(k_w, (nAC, nBC), jnp.float32)
    log_ac_tau_rise = jnp.log(0.05) + 0.01 * jax.random.normal(k_tr, (nAC,), jnp.float32)
    log_ac_tau_decay = jnp.log(0.20) + 0.01 * jax.random.normal(k_td, (nAC,), jnp.float32)
    log_ac_sigmoid_slope = jnp.log(2.0) + 0.01 * jax.random.normal(k_sl, (nAC,), jnp.float32)
    ac_sigmoid_offset = 0.1 * jax.random.normal(k_off, (nAC,), jnp.float32)

    # Precomputed quantities (as passed into forward())
    bc_ac_weight = jnp.exp(log_bc_ac_weight)                       # (nAC, nBC)
    ac_sigmoid_slope = jnp.exp(log_ac_sigmoid_slope)               # (nAC,)
    ac_kernel = compute_ac_kernel(log_ac_tau_rise, log_ac_tau_decay,
                                  kernel_time)                     # (nAC, K)

    # Batched input: B independent timestep windows of shape (nBC, T)
    x_batch = jax.random.normal(k_x, (B, nBC, T), jnp.float32)

    out = ac_feedback_forward_batched(x_batch, bc_ac_weight, ac_kernel,
                                      ac_sigmoid_offset, ac_sigmoid_slope)
    out = jax.block_until_ready(out)

    # Pure-JAX reference (exactly the PyTorch forward, per sample).
    def ref_forward(xb):
        h = bc_ac_weight @ xb                               # (nAC, T)
        h = jnp.pad(h, ((0, 0), (K - T, 0)))                # left-pad time to K
        s = jnp.sum(ac_kernel * h, axis=1)                  # (nAC,)
        return 1.0 / (1.0 + jnp.exp(-ac_sigmoid_slope * (s - ac_sigmoid_offset)))

    ref = jax.vmap(ref_forward)(x_batch)                    # (B, nAC)

    assert out.shape == (B, nAC)
    assert jnp.allclose(out, ref, atol=1e-4, rtol=1e-4), (
        float(jnp.max(jnp.abs(out - ref))))

    # Single-step API (same semantics as the original module's forward).
    out1 = ac_feedback_forward(x_batch[0], bc_ac_weight, ac_kernel,
                               ac_sigmoid_offset, ac_sigmoid_slope)
    out1 = jax.block_until_ready(out1)
    assert out1.shape == (nAC,)
    assert jnp.allclose(out1, ref[0], atol=1e-4, rtol=1e-4)

    print("KERNEL_OK")
</pallas_src>

<mosaic_0001>
module attributes {stable_mosaic.version = 11 : i64} {
  func.func @_ac_feedback_kernel(%arg0: i32, %arg1: memref<128x560xf32, #tpu.memory_space<vmem>>, %arg2: memref<560x4xf32, #tpu.memory_space<vmem>>, %arg3: memref<1x4xf32, #tpu.memory_space<vmem>>, %arg4: memref<128x4xf32, #tpu.memory_space<vmem>>) attributes {dimension_semantics = [#tpu.dimension_semantics<parallel>], iteration_bounds = array<i64: 2>, scalar_prefetch = 0 : i64, scratch_operands = 0 : i64, tpu.core_type = #tpu.core_type<tc>, window_params = [{transform_indices = @transform_0, window_bounds = array<i64: 128, 560>}, {pipeline_mode = #tpu.pipeline_mode<synchronous>, transform_indices = @transform_1, window_bounds = array<i64: 560, 4>}, {pipeline_mode = #tpu.pipeline_mode<synchronous>, transform_indices = @transform_2, window_bounds = array<i64: 1, 4>}, {transform_indices = @transform_3, window_bounds = array<i64: 128, 4>}]} {
    %c0 = arith.constant 0 : index
    %c0_0 = arith.constant 0 : index
    %0 = vector.load %arg1[%c0, %c0_0] : memref<128x560xf32, #tpu.memory_space<vmem>>, vector<128x560xf32>
    %c0_1 = arith.constant 0 : index
    %c0_2 = arith.constant 0 : index
    %1 = vector.load %arg2[%c0_1, %c0_2] : memref<560x4xf32, #tpu.memory_space<vmem>>, vector<560x4xf32>
    %cst = arith.constant dense<0.000000e+00> : vector<128x4xf32>
    %2 = tpu.matmul %0, %1, %cst {dimension_numbers = #tpu.dot_dimension_numbers<[1], [0], [0], [1], [0, 0, 1, 1], [], []>} : vector<128x560xf32>, vector<560x4xf32>, vector<128x4xf32> -> vector<128x4xf32>
    %c0_3 = arith.constant 0 : index
    %c0_4 = arith.constant 0 : index
    %3 = vector.load %arg3[%c0_3, %c0_4] : memref<1x4xf32, #tpu.memory_space<vmem>>, vector<1x4xf32>
    %4 = vector.broadcast %3 : vector<1x4xf32> to vector<128x4xf32>
    %5 = arith.subf %2, %4 : vector<128x4xf32>
    %cst_5 = arith.constant 0.000000e+00 : f32
    %6 = vector.broadcast %cst_5 : f32 to vector<128x4xf32>
    %7 = arith.subf %6, %5 : vector<128x4xf32>
    %8 = math.exp %7 : vector<128x4xf32>
    %cst_6 = arith.constant 1.000000e+00 : f32
    %9 = vector.broadcast %cst_6 : f32 to vector<128x4xf32>
    %10 = arith.addf %9, %8 : vector<128x4xf32>
    %cst_7 = arith.constant 1.000000e+00 : f32
    %11 = vector.broadcast %cst_7 : f32 to vector<128x4xf32>
    %12 = arith.divf %11, %10 : vector<128x4xf32>
    %c0_8 = arith.constant 0 : index
    %c0_9 = arith.constant 0 : index
    %13 = vector.load %arg4[%c0_8, %c0_9] : memref<128x4xf32, #tpu.memory_space<vmem>>, vector<128x4xf32>
    tpu.vector_store %arg4[%c0_8, %c0_9], %12 {strides = array<i32>} : memref<128x4xf32, #tpu.memory_space<vmem>>, vector<128x4xf32>,
    return
  }
  func.func @transform_0(%arg0: i32) -> (i32, i32) {
    %c0_i32 = arith.constant 0 : i32
    %c0_i32_0 = arith.constant 0 : i32
    return %arg0, %c0_i32 : i32, i32
  }
  func.func @transform_1(%arg0: i32) -> (i32, i32) {
    %c0_i32 = arith.constant 0 : i32
    %c0_i32_0 = arith.constant 0 : i32
    %c0_i32_1 = arith.constant 0 : i32
    return %c0_i32, %c0_i32_0 : i32, i32
  }
  func.func @transform_2(%arg0: i32) -> (i32, i32) {
    %c0_i32 = arith.constant 0 : i32
    %c0_i32_0 = arith.constant 0 : i32
    %c0_i32_1 = arith.constant 0 : i32
    return %c0_i32, %c0_i32_0 : i32, i32
  }
  func.func @transform_3(%arg0: i32) -> (i32, i32) {
    %c0_i32 = arith.constant 0 : i32
    %c0_i32_0 = arith.constant 0 : i32
    return %arg0, %c0_i32 : i32, i32
  }
}

</mosaic_0001>

<llo_original>
// kernel: tpu_custom_call.1
$region0: #{tpu_custom_call.1}
  #allocation0 [shape = 'u32[]', space=smem, size = 0x4, offset = 0x4, fixed_abs, tag = 'smem constant byte address 0x4 - core index']
  #allocation1 [shape = 'u32[144,128]{1,0:T(1,128)}', space=vmem, size = 0x12000, scoped, tag = 'internal scratch']
  %s0 = inlined_call_operand.hbm [shape: f32[200,560], index: 0, kind: input, shape index: {}]
  %s1 = inlined_call_operand.vmem [shape: f32[560,4], index: 1, kind: input, shape index: {}]
  %s2 = inlined_call_operand.vmem [shape: f32[1,4], index: 2, kind: input, shape index: {}]
  %s3 = inlined_call_operand.vmem [shape: f32[200,4], index: 3, kind: output, shape index: {}]
  %s4 = sld [smem:[#allocation0]]
  $region97: #{tpu_custom_call.1} parent=0
    _
  %s6 = ssub.s32 1, %s4
  %s7 = scalar_select 0, %s6, %s4
  $region1: #{tpu_custom_call.1} parent=0
    #allocation2 [shape = 'u8[655360]{0}', space=vmem, size = 0xa0000, scoped, tag = 'input window, operand 0']
    #allocation3 [shape = 's32[2]{0}', space=sflag, size = 0x8, scoped, tag = 'scoped memory for tpu_custom_call.1']
    #allocation4 [shape = 'u8[131072]{0}', space=vmem, size = 0x20000, scoped, tag = 'output window, operand 0']
    %8 = vsyncpa [#allocation3], 0
    %s9 = scalar_lea.sflag [#allocation3], 1
    %10 = vsyncpa %s9, 0
    loop: start=0, step=1, limit=4
    $region2: #{tpu_custom_call.1} parent=1 // loop_pre_header
      _
    $region3: #{tpu_custom_call.1} parent=1 // loop_header
      %s12 = sphi 0, %s16
      %p13 = scmp.ge.s32.totalorder %s12, 4
      %s22 = sphi 0, %s24
      %s25 = sphi 0, %s22
      %s26 = sphi 0, %s25
      %s42 = sphi 0, %s26
      %s46 = sphi 0, %s46
      %s48 = sphi 0, %s46
      %s49 = sphi 0, %s48
      %s63 = sphi 0, %s49
      %s67 = sphi 0, %s67
      %s69 = sphi 0, %s67
      %s70 = sphi 0, %s69
      %s84 = sphi 0, %s70
      %s90 = sphi 0, %s92
      %s93 = sphi 0, %s90
      %s94 = sphi 0, %s93
      %s110 = sphi 0, %s94
    $region4: #{tpu_custom_call.1} parent=1 // loop_header_branch
      %15 = sbr.rel (%p13) target = $region8
    $region5: #{tpu_custom_call.1} parent=1 // loop_body
      %s17 = ssub.s32 %s12, 1
      %s18 = ssub.s32 %s12, 2
      %s19 = sadd.s32 %s12, 1
      %s20 = ssub.s32 %s12, %s19
      %p21 = scmp.eq.s32.totalorder %s20, 0
      %s23 = sadd.s32 %s22, 1
      %s24 = scalar_select %p21, %s22, %s23
      %p27 = pneg %p21
      %p28 = scmp.eq.s32.totalorder %s12, 1
      %p29 = por %p27, %p28
      %p30 = scmp.ne.s32.totalorder %s22, %s25
      %p31 = scmp.eq.s32.totalorder %s12, 0
      %p32 = por %p30, %p31
      %p33 = scmp.ne.s32.totalorder %s22, %s25
      %p34 = scmp.eq.s32.totalorder %s17, 1
      %p35 = por %p33, %p34
      %p36 = scmp.ne.s32.totalorder %s25, %s26
      %p37 = scmp.eq.s32.totalorder %s17, 0
      %p38 = por %p36, %p37
      %p39 = scmp.ne.s32.totalorder %s25, %s26
      %p40 = scmp.eq.s32.totalorder %s18, 1
      %p41 = por %p39, %p40
      %p43 = scmp.ne.s32.totalorder %s26, %s42
      %p44 = scmp.eq.s32.totalorder %s18, 0
      %p45 = por %p43, %p44
      %s47 = sadd.s32 %s46, 1
      %p50 = scmp.eq.s32.totalorder %s12, 1
      %p51 = scmp.ne.s32.totalorder %s46, %s48
      %p52 = scmp.eq.s32.totalorder %s12, 0
      %p53 = por %p51, %p52
      %p54 = scmp.ne.s32.totalorder %s46, %s48
      %p55 = scmp.eq.s32.totalorder %s17, 1
      %p56 = por %p54, %p55
      %p57 = scmp.ne.s32.totalorder %s48, %s49
      %p58 = scmp.eq.s32.totalorder %s17, 0
      %p59 = por %p57, %p58
      %p60 = scmp.ne.s32.totalorder %s48, %s49
      %p61 = scmp.eq.s32.totalorder %s18, 1
      %p62 = por %p60, %p61
      %p64 = scmp.ne.s32.totalorder %s49, %s63
      %p65 = scmp.eq.s32.totalorder %s18, 0
      %p66 = por %p64, %p65
      %s68 = sadd.s32 %s67, 1
      %p71 = scmp.eq.s32.totalorder %s12, 1
      %p72 = scmp.ne.s32.totalorder %s67, %s69
      %p73 = scmp.eq.s32.totalorder %s12, 0
      %p74 = por %p72, %p73
      %p75 = scmp.ne.s32.totalorder %s67, %s69
      %p76 = scmp.eq.s32.totalorder %s17, 1
      %p77 = por %p75, %p76
      %p78 = scmp.ne.s32.totalorder %s69, %s70
      %p79 = scmp.eq.s32.totalorder %s17, 0
      %p80 = por %p78, %p79
      %p81 = scmp.ne.s32.totalorder %s69, %s70
      %p82 = scmp.eq.s32.totalorder %s18, 1
      %p83 = por %p81, %p82
      %p85 = scmp.ne.s32.totalorder %s70, %s84
      %p86 = scmp.eq.s32.totalorder %s18, 0
      %p87 = por %p85, %p86
      %s88 = ssub.s32 %s12, %s19
      %p89 = scmp.eq.s32.totalorder %s88, 0
      %s91 = sadd.s32 %s90, 1
      %s92 = scalar_select %p89, %s90, %s91
      %p95 = pneg %p89
      %p96 = scmp.eq.s32.totalorder %s12, 1
      %p97 = por %p95, %p96
      %p98 = scmp.ne.s32.totalorder %s90, %s93
      %p99 = scmp.eq.s32.totalorder %s12, 0
      %p100 = por %p98, %p99
      %p101 = scmp.ne.s32.totalorder %s90, %s93
      %p102 = scmp.eq.s32.totalorder %s17, 1
      %p103 = por %p101, %p102
      %p104 = scmp.ne.s32.totalorder %s93, %s94
      %p105 = scmp.eq.s32.totalorder %s17, 0
      %p106 = por %p104, %p105
      %p107 = scmp.ne.s32.totalorder %s93, %s94
      %p108 = scmp.eq.s32.totalorder %s18, 1
      %p109 = por %p107, %p108
      %p111 = scmp.ne.s32.totalorder %s94, %s110
      %p112 = scmp.eq.s32.totalorder %s18, 0
      %p113 = por %p111, %p112
      %p114 = scmp.le.s32.totalorder 1, %s12
      %p115 = scmp.lt.s32.totalorder %s12, 3
      %p116 = pnand %p114, %p115
      %p117 = pneg %p116
      // Predicated region
      $region9: #{tpu_custom_call.1} parent=5 // pred_check
        _
      $region10: #{tpu_custom_call.1} parent=5 // pred_check_branch
        %119 = sbr.rel (%p116) target = $region12
      $region11: #{tpu_custom_call.1} parent=5 // pred_region
        %s120 = ssub.s32 %s12, 1
        // Predicated region
        $region13: #{tpu_custom_call.1} parent=11 // pred_check
          %p121 = pneg %p59
        $region14: #{tpu_custom_call.1} parent=11 // pred_check_branch
          %123 = sbr.rel (%p121) target = $region16
        $region15: #{tpu_custom_call.1} parent=11 // pred_region
          _
        $region16: #{tpu_custom_call.1} parent=11 // pred_fallthru
          _
        // Predicated region
        $region17: #{tpu_custom_call.1} parent=11 // pred_check
          %p124 = pneg %p80
        $region18: #{tpu_custom_call.1} parent=11 // pred_check_branch
          %126 = sbr.rel (%p124) target = $region20
        $region19: #{tpu_custom_call.1} parent=11 // pred_region
          _
        $region20: #{tpu_custom_call.1} parent=11 // pred_fallthru
          _
      $region12: #{tpu_custom_call.1} parent=5 // pred_fallthru
        _
      %p127 = scmp.lt.s32.totalorder %s12, 2
      // Predicated region
      $region21: #{tpu_custom_call.1} parent=5 // pred_check
        %p128 = pneg %p127
      $region22: #{tpu_custom_call.1} parent=5 // pred_check_branch
        %130 = sbr.rel (%p128) target = $region24
      $region23: #{tpu_custom_call.1} parent=5 // pred_region
        // Predicated region
        $region25: #{tpu_custom_call.1} parent=23 // pred_check
          %p131 = pneg %p32
        $region26: #{tpu_custom_call.1} parent=23 // pred_check_branch
          %133 = sbr.rel (%p131) target = $region28
        $region27: #{tpu_custom_call.1} parent=23 // pred_region
          %s134 = sand.u32 %s22, 1
          %s135 = scalar_lea.sflag [#allocation3], %s134
          %s136 = sand.u32 %s22, 1
          %s137 = smul.addr %s136, 640
          %s138 = scalar_lea.vmem [#allocation2], %s137
          %s139 = smul.u32 16, %s12
          %s140 = ssub.s32 25, %s139
          %p141 = scmp.lt.s32.totalorder %s140, 16
          %s142 = scalar_select %p141, %s140, 16
          %s143 = smul.u32 128, %s142
          %s144 = smul.u32 %s143, 5
          %s146 = ssub.s32 10240, %s144
          %147 = vsyncadd %s135, %s146
          %p148 = scmp.ne.s32.totalorder 0, %s144
          %s149 = smul.addr %s139, 5
          %s150 = smul.addr %s149, 128
          %s151 = scalar_lea.hbm %s0, %s150
          %s152 = smul.u32 40, %s142
          %s153 = sshll.u32 %s138, 4
          %s154 = int_to_ptr.vmem [resolvable:$true] %s153
          %s155 = sshll.u32 %s152, 4
          %159 = dma.hbm_to_vmem [thread:$0]  (%p148), %s151, %s155, %s154, %s135, 640, 640, 40
        $region28: #{tpu_custom_call.1} parent=23 // pred_fallthru
          _
      $region24: #{tpu_custom_call.1} parent=5 // pred_fallthru
        _
      %p160 = scmp.le.s32.totalorder 1, %s12
      %p161 = scmp.lt.s32.totalorder %s12, 3
      %p162 = pnand %p160, %p161
      %p163 = pneg %p162
      // Predicated region
      $region29: #{tpu_custom_call.1} parent=5 // pred_check
        _
      $region30: #{tpu_custom_call.1} parent=5 // pred_check_branch
        %165 = sbr.rel (%p162) target = $region32
      $region31: #{tpu_custom_call.1} parent=5 // pred_region
        %s166 = ssub.s32 %s12, 1
        %s167 = sand.u32 %s25, 1
        %s168 = scalar_lea.sflag [#allocation3], %s167
        %s169 = sand.u32 %s25, 1
        %s170 = smul.addr %s169, 640
        %s171 = scalar_lea.vmem [#allocation2], %s170
        // Predicated region
        $region33: #{tpu_custom_call.1} parent=31 // pred_check
          %p172 = pneg %p38
        $region34: #{tpu_custom_call.1} parent=31 // pred_check_branch
          %174 = sbr.rel (%p172) target = $region36
        $region35: #{tpu_custom_call.1} parent=31 // pred_region
          %175 = dma.done %s168, 10240
        $region36: #{tpu_custom_call.1} parent=31 // pred_fallthru
          _
        %s176 = sand.u32 %s25, 1
        %s177 = scalar_lea.sflag [#allocation3], %s176
        %s178 = sand.u32 %s25, 1
        %s179 = smul.addr %s178, 640
        %s180 = scalar_lea.vmem [#allocation2], %s179
        %p181 = pneg %p38
        %p182 = pneg %p35
        %p183 = pneg %p59
        %p184 = pneg %p56
        %p185 = pneg %p80
        %p186 = pneg %p77
        %p187 = pneg %p106
        %p188 = pneg %p103
        %s189 = sand.u32 %s93, 1
        %s190 = sand.u32 %s93, 1
        %s191 = smul.addr %s190, 128
        %s192 = scalar_lea.vmem [#allocation4], %s191
        %s193 = smul.u32 16, %s17
        %s194 = ssub.s32 25, %s193
        %p195 = scmp.lt.s32.totalorder %s194, 16
        %s196 = scalar_select %p195, %s194, 16
        %s197 = smul.u32 128, %s196
        %s198 = smul.u32 %s197, 5
        %s199 = smul.u32 16, %s17
        %s200 = ssub.s32 25, %s199
        %p201 = scmp.lt.s32.totalorder %s200, 16
        %s202 = scalar_select %p201, %s200, 16
        %s203 = smul.u32 128, %s202
        %v204 = vld [vmem:[%s171] sm:$0xff]
        %v205 = vld [vmem:[%s171 + $0x8] sm:$0xff]
        %v206 = vld [vmem:[%s171 + $0x10] sm:$0xff]
        %v207 = vld [vmem:[%s171 + $0x18] sm:$0xff]
        %v208 = vld [vmem:[%s171 + $0x20] sm:$0xff]
        %v209 = vld [vmem:[%s171 + $0x28] sm:$0xff]
        %v210 = vld [vmem:[%s171 + $0x30] sm:$0xff]
        %v211 = vld [vmem:[%s171 + $0x38] sm:$0xff]
        %v212 = vld [vmem:[%s171 + $0x40] sm:$0xff]
        %v213 = vld [vmem:[%s171 + $0x48] sm:$0xff]
        %v214 = vld [vmem:[%s171 + $0x50] sm:$0xff]
        %v215 = vld [vmem:[%s171 + $0x58] sm:$0xff]
        %v216 = vld [vmem:[%s171 + $0x60] sm:$0xff]
        %v217 = vld [vmem:[%s171 + $0x68] sm:$0xff]
        %v218 = vld [vmem:[%s171 + $0x70] sm:$0xff]
        %v219 = vld [vmem:[%s171 + $0x78] sm:$0xff]
        %v220 = vld [vmem:[%s171 + $0x80] sm:$0xff]
        %v221 = vld [vmem:[%s171 + $0x88] sm:$0xff]
        %v222 = vld [vmem:[%s171 + $0x90] sm:$0xff]
        %v223 = vld [vmem:[%s171 + $0x98] sm:$0xff]
        %v224 = vld [vmem:[%s171 + $0xa0] sm:$0xff]
        %v225 = vld [vmem:[%s171 + $0xa8] sm:$0xff]
        %v226 = vld [vmem:[%s171 + $0xb0] sm:$0xff]
        %v227 = vld [vmem:[%s171 + $0xb8] sm:$0xff]
        %v228 = vld [vmem:[%s171 + $0xc0] sm:$0xff]
        %v229 = vld [vmem:[%s171 + $0xc8] sm:$0xff]
        %v230 = vld [vmem:[%s171 + $0xd0] sm:$0xff]
        %v231 = vld [vmem:[%s171 + $0xd8] sm:$0xff]
        %v232 = vld [vmem:[%s171 + $0xe0] sm:$0xff]
        %v233 = vld [vmem:[%s171 + $0xe8] sm:$0xff]
        %v234 = vld [vmem:[%s171 + $0xf0] sm:$0xff]
        %v235 = vld [vmem:[%s171 + $0xf8] sm:$0xff]
        %v236 = vld [vmem:[%s171 + $0x100] sm:$0xff]
        %v237 = vld [vmem:[%s171 + $0x108] sm:$0xff]
        %v238 = vld [vmem:[%s171 + $0x110] sm:$0xff]
        %v239 = vld [vmem:[%s171 + $0x118] sm:$0xff]
        %v240 = vld [vmem:[%s171 + $0x120] sm:$0xff]
        %v241 = vld [vmem:[%s171 + $0x128] sm:$0xff]
        %v242 = vld [vmem:[%s171 + $0x130] sm:$0xff]
        %v243 = vld [vmem:[%s171 + $0x138] sm:$0xff]
        %v244 = vld [vmem:[%s171 + $0x140] sm:$0xff]
        %v245 = vld [vmem:[%s171 + $0x148] sm:$0xff]
        %v246 = vld [vmem:[%s171 + $0x150] sm:$0xff]
        %v247 = vld [vmem:[%s171 + $0x158] sm:$0xff]
        %v248 = vld [vmem:[%s171 + $0x160] sm:$0xff]
        %v249 = vld [vmem:[%s171 + $0x168] sm:$0xff]
        %v250 = vld [vmem:[%s171 + $0x170] sm:$0xff]
        %v251 = vld [vmem:[%s171 + $0x178] sm:$0xff]
        %v252 = vld [vmem:[%s171 + $0x180] sm:$0xff]
        %v253 = vld [vmem:[%s171 + $0x188] sm:$0xff]
        %v254 = vld [vmem:[%s171 + $0x190] sm:$0xff]
        %v255 = vld [vmem:[%s171 + $0x198] sm:$0xff]
        %v256 = vld [vmem:[%s171 + $0x1a0] sm:$0xff]
        %v257 = vld [vmem:[%s171 + $0x1a8] sm:$0xff]
        %v258 = vld [vmem:[%s171 + $0x1b0] sm:$0xff]
        %v259 = vld [vmem:[%s171 + $0x1b8] sm:$0xff]
        %v260 = vld [vmem:[%s171 + $0x1c0] sm:$0xff]
        %v261 = vld [vmem:[%s171 + $0x1c8] sm:$0xff]
        %v262 = vld [vmem:[%s171 + $0x1d0] sm:$0xff]
        %v263 = vld [vmem:[%s171 + $0x1d8] sm:$0xff]
        %v264 = vld [vmem:[%s171 + $0x1e0] sm:$0xff]
        %v265 = vld [vmem:[%s171 + $0x1e8] sm:$0xff]
        %v266 = vld [vmem:[%s171 + $0x1f0] sm:$0xff]
        %v267 = vld [vmem:[%s171 + $0x1f8] sm:$0xff]
        %v268 = vld [vmem:[%s171 + $0x200] sm:$0xff]
        %v269 = vld [vmem:[%s171 + $0x208] sm:$0xff]
        %v270 = vld [vmem:[%s171 + $0x210] sm:$0xff]
        %v271 = vld [vmem:[%s171 + $0x218] sm:$0xff]
        %v272 = vld [vmem:[%s171 + $0x220] sm:$0xff]
        %v273 = vld [vmem:[%s171 + $0x228] sm:$0xff]
        %v274 = vld [vmem:[%s171 + $0x230] sm:$0xff]
        %v275 = vld [vmem:[%s171 + $0x238] sm:$0xff]
        %v276 = vld [vmem:[%s171 + $0x240] sm:$0xff]
        %v277 = vld [vmem:[%s171 + $0x248] sm:$0xff]
        %v278 = vld [vmem:[%s171 + $0x250] sm:$0xff]
        %v279 = vld [vmem:[%s171 + $0x258] sm:$0xff]
        %v280 = vld [vmem:[%s171 + $0x260] sm:$0xff]
        %v281 = vld [vmem:[%s171 + $0x268] sm:$0xff]
        %v282 = vld [vmem:[%s171 + $0x270] sm:$0xff]
        %v283 = vld [vmem:[%s171 + $0x278] sm:$0xff]
        %v284 = vld [vmem:[%s1] sm:$0xff]
        %v285 = vld [vmem:[%s1 + $0x8] sm:$0xff]
        %v286 = vld [vmem:[%s1 + $0x10] sm:$0xff]
        %v287 = vld [vmem:[%s1 + $0x18] sm:$0xff]
        %v288 = vld [vmem:[%s1 + $0x20] sm:$0xff]
        %v289 = vld [vmem:[%s1 + $0x28] sm:$0xff]
        %v290 = vld [vmem:[%s1 + $0x30] sm:$0xff]
        %v291 = vld [vmem:[%s1 + $0x38] sm:$0xff]
        %v292 = vld [vmem:[%s1 + $0x40] sm:$0xff]
        %v293 = vld [vmem:[%s1 + $0x48] sm:$0xff]
        %v294 = vld [vmem:[%s1 + $0x50] sm:$0xff]
        %v295 = vld [vmem:[%s1 + $0x58] sm:$0xff]
        %v296 = vld [vmem:[%s1 + $0x60] sm:$0xff]
        %v297 = vld [vmem:[%s1 + $0x68] sm:$0xff]
        %v298 = vld [vmem:[%s1 + $0x70] sm:$0xff]
        %v299 = vld [vmem:[%s1 + $0x78] sm:$0xff]
        %v300 = vld [vmem:[%s1 + $0x80] sm:$0xff]
        %v301 = vld [vmem:[%s1 + $0x88] sm:$0xff]
        %v302 = vld [vmem:[%s1 + $0x90] sm:$0xff]
        %v303 = vld [vmem:[%s1 + $0x98] sm:$0xff]
        %v304 = vld [vmem:[%s1 + $0xa0] sm:$0xff]
        %v305 = vld [vmem:[%s1 + $0xa8] sm:$0xff]
        %v306 = vld [vmem:[%s1 + $0xb0] sm:$0xff]
        %v307 = vld [vmem:[%s1 + $0xb8] sm:$0xff]
        %v308 = vld [vmem:[%s1 + $0xc0] sm:$0xff]
        %v309 = vld [vmem:[%s1 + $0xc8] sm:$0xff]
        %v310 = vld [vmem:[%s1 + $0xd0] sm:$0xff]
        %v311 = vld [vmem:[%s1 + $0xd8] sm:$0xff]
        %v312 = vld [vmem:[%s1 + $0xe0] sm:$0xff]
        %v313 = vld [vmem:[%s1 + $0xe8] sm:$0xff]
        %v314 = vld [vmem:[%s1 + $0xf0] sm:$0xff]
        %v315 = vld [vmem:[%s1 + $0xf8] sm:$0xff]
        %v316 = vld [vmem:[%s1 + $0x100] sm:$0xff]
        %v317 = vld [vmem:[%s1 + $0x108] sm:$0xff]
        %v318 = vld [vmem:[%s1 + $0x110] sm:$0xff]
        %v319 = vld [vmem:[%s1 + $0x118] sm:$0xff]
        %v320 = vld [vmem:[%s1 + $0x120] sm:$0xff]
        %v321 = vld [vmem:[%s1 + $0x128] sm:$0xff]
        %v322 = vld [vmem:[%s1 + $0x130] sm:$0xff]
        %v323 = vld [vmem:[%s1 + $0x138] sm:$0xff]
        %v324 = vld [vmem:[%s1 + $0x140] sm:$0xff]
        %v325 = vld [vmem:[%s1 + $0x148] sm:$0xff]
        %v326 = vld [vmem:[%s1 + $0x150] sm:$0xff]
        %v327 = vld [vmem:[%s1 + $0x158] sm:$0xff]
        %v328 = vld [vmem:[%s1 + $0x160] sm:$0xff]
        %v329 = vld [vmem:[%s1 + $0x168] sm:$0xff]
        %v330 = vld [vmem:[%s1 + $0x170] sm:$0xff]
        %v331 = vld [vmem:[%s1 + $0x178] sm:$0xff]
        %v332 = vld [vmem:[%s1 + $0x180] sm:$0xff]
        %v333 = vld [vmem:[%s1 + $0x188] sm:$0xff]
        %v334 = vld [vmem:[%s1 + $0x190] sm:$0xff]
        %v335 = vld [vmem:[%s1 + $0x198] sm:$0xff]
        %v336 = vld [vmem:[%s1 + $0x1a0] sm:$0xff]
        %v337 = vld [vmem:[%s1 + $0x1a8] sm:$0xff]
        %v338 = vld [vmem:[%s1 + $0x1b0] sm:$0xff]
        %v339 = vld [vmem:[%s1 + $0x1b8] sm:$0xff]
        %v340 = vld [vmem:[%s1 + $0x1c0] sm:$0xff]
        %v341 = vld [vmem:[%s1 + $0x1c8] sm:$0xff]
        %v342 = vld [vmem:[%s1 + $0x1d0] sm:$0xff]
        %v343 = vld [vmem:[%s1 + $0x1d8] sm:$0xff]
        %v344 = vld [vmem:[%s1 + $0x1e0] sm:$0xff]
        %v345 = vld [vmem:[%s1 + $0x1e8] sm:$0xff]
        %v346 = vld [vmem:[%s1 + $0x1f0] sm:$0xff]
        %v347 = vld [vmem:[%s1 + $0x1f8] sm:$0xff]
        %v348 = vld [vmem:[%s1 + $0x200] sm:$0xff]
        %v349 = vld [vmem:[%s1 + $0x208] sm:$0xff]
        %v350 = vld [vmem:[%s1 + $0x210] sm:$0xff]
        %v351 = vld [vmem:[%s1 + $0x218] sm:$0xff]
        %v352 = vld [vmem:[%s1 + $0x220] sm:$0xff]
        %v353 = vld [vmem:[%s1 + $0x228] sm:$0xff]
        %vm354 = vcmask 392192
        %v356 = vsel %vm354, %v208, 0
        %v359 = vsel %vm354, %v213, 0
        %v362 = vsel %vm354, %v218, 0
        %v365 = vsel %vm354, %v223, 0
        %v368 = vsel %vm354, %v228, 0
        %v371 = vsel %vm354, %v233, 0
        %v374 = vsel %vm354, %v238, 0
        %v377 = vsel %vm354, %v243, 0
        %v380 = vsel %vm354, %v248, 0
        %v383 = vsel %vm354, %v253, 0
        %v386 = vsel %vm354, %v258, 0
        %v389 = vsel %vm354, %v263, 0
        %v392 = vsel %vm354, %v268, 0
        %v395 = vsel %vm354, %v273, 0
        %v398 = vsel %vm354, %v278, 0
        %v401 = vsel %vm354, %v283, 0
        %403 = vmatprep.subr.mxu0 0.0
        %404 = vmatpush1.msra.mxu0 %v284
        %405 = vmatprep.subr.mxu0 0.0
        %406 = vmatpush1.msra.mxu0 %v285
        %407 = vmatprep.subr.mxu0 0.0
        %408 = vmatpush1.msra.mxu0 %v286
        %409 = vmatprep.subr.mxu0 0.0
        %410 = vmatpush1.msra.mxu0 %v287
        %411 = vmatprep.subr.mxu0 0.0
        %412 = vmatpush1.msra.mxu0 %v288
        %413 = vmatprep.subr.mxu0 0.0
        %414 = vmatpush1.msra.mxu0 %v289
        %415 = vmatprep.subr.mxu0 0.0
        %416 = vmatpush1.msra.mxu0 %v290
        %417 = vmatprep.subr.mxu0 0.0
        %418 = vmatpush1.msra.mxu0 %v291
        %419 = vmatprep.subr.mxu0 0.0
        %420 = vmatpush1.msra.mxu0 %v292
        %421 = vmatprep.subr.mxu0 0.0
        %422 = vmatpush1.msra.mxu0 %v293
        %423 = vmatprep.subr.mxu0 0.0
        %424 = vmatpush1.msra.mxu0 %v294
        %425 = vmatprep.subr.mxu0 0.0
        %426 = vmatpush1.msra.mxu0 %v295
        %427 = vmatprep.subr.mxu0 0.0
        %428 = vmatpush1.msra.mxu0 %v296
        %429 = vmatprep.subr.mxu0 0.0
        %430 = vmatpush1.msra.mxu0 %v297
        %431 = vmatprep.subr.mxu0 0.0
        %432 = vmatpush1.msra.mxu0 %v298
        %433 = vmatprep.subr.mxu0 0.0
        %434 = vmatpush1.msra.mxu0 %v299
        %435 = vmatprep.subr.mxu0 0.0
        %436 = vmatpush1.msra.mxu0 %v300
        %437 = vmatprep.subr.mxu0 0.0
        %438 = vmatpush1.msra.mxu0 %v301
        %439 = vmatprep.subr.mxu0 0.0
        %440 = vmatpush1.msra.mxu0 %v302
        %441 = vmatprep.subr.mxu0 0.0
        %442 = vmatpush1.msra.mxu0 %v303
        %443 = vmatprep.subr.mxu0 0.0
        %444 = vmatpush1.msra.mxu0 %v304
        %445 = vmatprep.subr.mxu0 0.0
        %446 = vmatpush1.msra.mxu0 %v305
        %447 = vmatprep.subr.mxu0 0.0
        %448 = vmatpush1.msra.mxu0 %v306
        %449 = vmatprep.subr.mxu0 0.0
        %450 = vmatpush1.msra.mxu0 %v307
        %451 = vmatprep.subr.mxu0 0.0
        %452 = vmatpush1.msra.mxu0 %v308
        %453 = vmatprep.subr.mxu0 0.0
        %454 = vmatpush1.msra.mxu0 %v309
        %455 = vmatprep.subr.mxu0 0.0
        %456 = vmatpush1.msra.mxu0 %v310
        %457 = vmatprep.subr.mxu0 0.0
        %458 = vmatpush1.msra.mxu0 %v311
        %459 = vmatprep.subr.mxu0 0.0
        %460 = vmatpush1.msra.mxu0 %v312
        %461 = vmatprep.subr.mxu0 0.0
        %462 = vmatpush1.msra.mxu0 %v313
        %463 = vmatprep.subr.mxu0 0.0
        %464 = vmatpush1.msra.mxu0 %v314
        %465 = vmatprep.subr.mxu0 0.0
        %466 = vmatpush1.msra.mxu0 %v315
        %467 = vmatprep.mubr.f32.mxu0 %v205
        %468 = vmatmul.mubr.f32.gmra.mrb[0].mxu0 %v204
        %v469 = vpop.f32.mrb[0].mxu0
        %v470 = vadd.f32 0.0, %v469
        %v471 = vpop.f32.mrb[0].mxu0
        %472 = vmatprep.mubr.f32.mxu0 %v210
        %473 = vmatmul.mubr.f32.gmra.mrb[0].mxu0 %v209
        %v474 = vpop.f32.mrb[0].mxu0
        %v475 = vadd.f32 0.0, %v474
        %v476 = vpop.f32.mrb[0].mxu0
        %477 = vmatprep.mubr.f32.mxu0 %v215
        %478 = vmatmul.mubr.f32.gmra.mrb[0].mxu0 %v214
        %v479 = vpop.f32.mrb[0].mxu0
        %v480 = vadd.f32 0.0, %v479
        %v481 = vpop.f32.mrb[0].mxu0
        %482 = vmatprep.mubr.f32.mxu0 %v220
        %483 = vmatmul.mubr.f32.gmra.mrb[0].mxu0 %v219
        %v484 = vpop.f32.mrb[0].mxu0
        %v485 = vadd.f32 0.0, %v484
        %v486 = vpop.f32.mrb[0].mxu0
        %487 = vmatprep.mubr.f32.mxu0 %v225
        %488 = vmatmul.mubr.f32.gmra.mrb[0].mxu0 %v224
        %v489 = vpop.f32.mrb[0].mxu0
        %v490 = vadd.f32 0.0, %v489
        %v491 = vpop.f32.mrb[0].mxu0
        %492 = vmatprep.mubr.f32.mxu0 %v230
        %493 = vmatmul.mubr.f32.gmra.mrb[0].mxu0 %v229
        %v494 = vpop.f32.mrb[0].mxu0
        %v495 = vadd.f32 0.0, %v494
        %v496 = vpop.f32.mrb[0].mxu0
        %497 = vmatprep.mubr.f32.mxu0 %v235
        %498 = vmatmul.mubr.f32.gmra.mrb[0].mxu0 %v234
        %v499 = vpop.f32.mrb[0].mxu0
        %v500 = vadd.f32 0.0, %v499
        %v501 = vpop.f32.mrb[0].mxu0
        %502 = vmatprep.mubr.f32.mxu0 %v240
        %503 = vmatmul.mubr.f32.gmra.mrb[0].mxu0 %v239
        %v504 = vpop.f32.mrb[0].mxu0
        %v505 = vadd.f32 0.0, %v504
        %v506 = vpop.f32.mrb[0].mxu0
        %507 = vmatprep.mubr.f32.mxu0 %v245
        %508 = vmatmul.mubr.f32.gmra.mrb[0].mxu0 %v244
        %v509 = vpop.f32.mrb[0].mxu0
        %v510 = vadd.f32 0.0, %v509
        %v511 = vpop.f32.mrb[0].mxu0
        %512 = vmatprep.mubr.f32.mxu0 %v250
        %513 = vmatmul.mubr.f32.gmra.mrb[0].mxu0 %v249
        %v514 = vpop.f32.mrb[0].mxu0
        %v515 = vadd.f32 0.0, %v514
        %v516 = vpop.f32.mrb[0].mxu0
        %517 = vmatprep.mubr.f32.mxu0 %v255
        %518 = vmatmul.mubr.f32.gmra.mrb[0].mxu0 %v254
        %v519 = vpop.f32.mrb[0].mxu0
        %v520 = vadd.f32 0.0, %v519
        %v521 = vpop.f32.mrb[0].mxu0
        %522 = vmatprep.mubr.f32.mxu0 %v260
        %523 = vmatmul.mubr.f32.gmra.mrb[0].mxu0 %v259
        %v524 = vpop.f32.mrb[0].mxu0
        %v525 = vadd.f32 0.0, %v524
        %v526 = vpop.f32.mrb[0].mxu0
        %527 = vmatprep.mubr.f32.mxu0 %v265
        %528 = vmatmul.mubr.f32.gmra.mrb[0].mxu0 %v264
        %v529 = vpop.f32.mrb[0].mxu0
        %v530 = vadd.f32 0.0, %v529
        %v531 = vpop.f32.mrb[0].mxu0
        %532 = vmatprep.mubr.f32.mxu0 %v270
        %533 = vmatmul.mubr.f32.gmra.mrb[0].mxu0 %v269
        %v534 = vpop.f32.mrb[0].mxu0
        %v535 = vadd.f32 0.0, %v534
        %v536 = vpop.f32.mrb[0].mxu0
        %537 = vmatprep.mubr.f32.mxu0 %v275
        %538 = vmatmul.mubr.f32.gmra.mrb[0].mxu0 %v274
        %v539 = vpop.f32.mrb[0].mxu0
        %v540 = vadd.f32 0.0, %v539
        %v541 = vpop.f32.mrb[0].mxu0
        %542 = vmatprep.mubr.f32.mxu0 %v280
        %543 = vmatmul.mubr.f32.gmra.mrb[0].mxu0 %v279
        %v544 = vpop.f32.mrb[0].mxu0
        %v545 = vadd.f32 0.0, %v544
        %v546 = vpop.f32.mrb[0].mxu0
        %547 = vdwg.mxu0
        %548 = vmatprep.subr.mxu0 0.0
        %549 = vmatpush1.msra.mxu0 %v316
        %550 = vmatprep.subr.mxu0 0.0
        %551 = vmatpush1.msra.mxu0 %v317
        %552 = vmatprep.subr.mxu0 0.0
        %553 = vmatpush1.msra.mxu0 %v318
        %554 = vmatprep.subr.mxu0 0.0
        %555 = vmatpush1.msra.mxu0 %v319
        %556 = vmatprep.subr.mxu0 0.0
        %557 = vmatpush1.msra.mxu0 %v320
        %558 = vmatprep.subr.mxu0 0.0
        %559 = vmatpush1.msra.mxu0 %v321
        %560 = vmatprep.subr.mxu0 0.0
        %561 = vmatpush1.msra.mxu0 %v322
        %562 = vmatprep.subr.mxu0 0.0
        %563 = vmatpush1.msra.mxu0 %v323
        %564 = vmatprep.subr.mxu0 0.0
        %565 = vmatpush1.msra.mxu0 %v324
        %566 = vmatprep.subr.mxu0 0.0
        %567 = vmatpush1.msra.mxu0 %v325
        %568 = vmatprep.subr.mxu0 0.0
        %569 = vmatpush1.msra.mxu0 %v326
        %570 = vmatprep.subr.mxu0 0.0
        %571 = vmatpush1.msra.mxu0 %v327
        %572 = vmatprep.subr.mxu0 0.0
        %573 = vmatpush1.msra.mxu0 %v328
        %574 = vmatprep.subr.mxu0 0.0
        %575 = vmatpush1.msra.mxu0 %v329
        %576 = vmatprep.subr.mxu0 0.0
        %577 = vmatpush1.msra.mxu0 %v330
        %578 = vmatprep.subr.mxu0 0.0
        %579 = vmatpush1.msra.mxu0 %v331
        %580 = vmatprep.subr.mxu0 0.0
        %581 = vmatpush1.msra.mxu0 %v332
        %582 = vmatprep.subr.mxu0 0.0
        %583 = vmatpush1.msra.mxu0 %v333
        %584 = vmatprep.subr.mxu0 0.0
        %585 = vmatpush1.msra.mxu0 %v334
        %586 = vmatprep.subr.mxu0 0.0
        %587 = vmatpush1.msra.mxu0 %v335
        %588 = vmatprep.subr.mxu0 0.0
        %589 = vmatpush1.msra.mxu0 %v336
        %590 = vmatprep.subr.mxu0 0.0
        %591 = vmatpush1.msra.mxu0 %v337
        %592 = vmatprep.subr.mxu0 0.0
        %593 = vmatpush1.msra.mxu0 %v338
        %594 = vmatprep.subr.mxu0 0.0
        %595 = vmatpush1.msra.mxu0 %v339
        %596 = vmatprep.subr.mxu0 0.0
        %597 = vmatpush1.msra.mxu0 %v340
        %598 = vmatprep.subr.mxu0 0.0
        %599 = vmatpush1.msra.mxu0 %v341
        %600 = vmatprep.subr.mxu0 0.0
        %601 = vmatpush1.msra.mxu0 %v342
        %602 = vmatprep.subr.mxu0 0.0
        %603 = vmatpush1.msra.mxu0 %v343
        %604 = vmatprep.subr.mxu0 0.0
        %605 = vmatpush1.msra.mxu0 %v344
        %606 = vmatprep.subr.mxu0 0.0
        %607 = vmatpush1.msra.mxu0 %v345
        %608 = vmatprep.subr.mxu0 0.0
        %609 = vmatpush1.msra.mxu0 %v346
        %610 = vmatprep.subr.mxu0 0.0
        %611 = vmatpush1.msra.mxu0 %v347
        %612 = vmatprep.mubr.f32.mxu0 %v207
        %613 = vmatmul.mubr.f32.gmra.mrb[0].mxu0 %v206
        %v614 = vpop.f32.mrb[0].mxu0
        %v615 = vadd.f32 %v470, %v614
        %v616 = vpop.f32.mrb[0].mxu0
        %617 = vmatprep.mubr.f32.mxu0 %v212
        %618 = vmatmul.mubr.f32.gmra.mrb[0].mxu0 %v211
        %v619 = vpop.f32.mrb[0].mxu0
        %v620 = vadd.f32 %v475, %v619
        %v621 = vpop.f32.mrb[0].mxu0
        %622 = vmatprep.mubr.f32.mxu0 %v217
        %623 = vmatmul.mubr.f32.gmra.mrb[0].mxu0 %v216
        %v624 = vpop.f32.mrb[0].mxu0
        %v625 = vadd.f32 %v480, %v624
        %v626 = vpop.f32.mrb[0].mxu0
        %627 = vmatprep.mubr.f32.mxu0 %v222
        %628 = vmatmul.mubr.f32.gmra.mrb[0].mxu0 %v221
        %v629 = vpop.f32.mrb[0].mxu0
        %v630 = vadd.f32 %v485, %v629
        %v631 = vpop.f32.mrb[0].mxu0
        %632 = vmatprep.mubr.f32.mxu0 %v227
        %633 = vmatmul.mubr.f32.gmra.mrb[0].mxu0 %v226
        %v634 = vpop.f32.mrb[0].mxu0
        %v635 = vadd.f32 %v490, %v634
        %v636 = vpop.f32.mrb[0].mxu0
        %637 = vmatprep.mubr.f32.mxu0 %v232
        %638 = vmatmul.mubr.f32.gmra.mrb[0].mxu0 %v231
        %v639 = vpop.f32.mrb[0].mxu0
        %v640 = vadd.f32 %v495, %v639
        %v641 = vpop.f32.mrb[0].mxu0
        %642 = vmatprep.mubr.f32.mxu0 %v237
        %643 = vmatmul.mubr.f32.gmra.mrb[0].mxu0 %v236
        %v644 = vpop.f32.mrb[0].mxu0
        %v645 = vadd.f32 %v500, %v644
        %v646 = vpop.f32.mrb[0].mxu0
        %647 = vmatprep.mubr.f32.mxu0 %v242
        %648 = vmatmul.mubr.f32.gmra.mrb[0].mxu0 %v241
        %v649 = vpop.f32.mrb[0].mxu0
        %v650 = vadd.f32 %v505, %v649
        %v651 = vpop.f32.mrb[0].mxu0
        %652 = vmatprep.mubr.f32.mxu0 %v247
        %653 = vmatmul.mubr.f32.gmra.mrb[0].mxu0 %v246
        %v654 = vpop.f32.mrb[0].mxu0
        %v655 = vadd.f32 %v510, %v654
        %v656 = vpop.f32.mrb[0].mxu0
        %657 = vmatprep.mubr.f32.mxu0 %v252
        %658 = vmatmul.mubr.f32.gmra.mrb[0].mxu0 %v251
        %v659 = vpop.f32.mrb[0].mxu0
        %v660 = vadd.f32 %v515, %v659
        %v661 = vpop.f32.mrb[0].mxu0
        %662 = vmatprep.mubr.f32.mxu0 %v257
        %663 = vmatmul.mubr.f32.gmra.mrb[0].mxu0 %v256
        %v664 = vpop.f32.mrb[0].mxu0
        %v665 = vadd.f32 %v520, %v664
        %v666 = vpop.f32.mrb[0].mxu0
        %667 = vmatprep.mubr.f32.mxu0 %v262
        %668 = vmatmul.mubr.f32.gmra.mrb[0].mxu0 %v261
        %v669 = vpop.f32.mrb[0].mxu0
        %v670 = vadd.f32 %v525, %v669
        %v671 = vpop.f32.mrb[0].mxu0
        %672 = vmatprep.mubr.f32.mxu0 %v267
        %673 = vmatmul.mubr.f32.gmra.mrb[0].mxu0 %v266
        %v674 = vpop.f32.mrb[0].mxu0
        %v675 = vadd.f32 %v530, %v674
        %v676 = vpop.f32.mrb[0].mxu0
        %677 = vmatprep.mubr.f32.mxu0 %v272
        %678 = vmatmul.mubr.f32.gmra.mrb[0].mxu0 %v271
        %v679 = vpop.f32.mrb[0].mxu0
        %v680 = vadd.f32 %v535, %v679
        %v681 = vpop.f32.mrb[0].mxu0
        %682 = vmatprep.mubr.f32.mxu0 %v277
        %683 = vmatmul.mubr.f32.gmra.mrb[0].mxu0 %v276
        %v684 = vpop.f32.mrb[0].mxu0
        %v685 = vadd.f32 %v540, %v684
        %v686 = vpop.f32.mrb[0].mxu0
        %687 = vmatprep.mubr.f32.mxu0 %v282
        %688 = vmatmul.mubr.f32.gmra.mrb[0].mxu0 %v281
        %v689 = vpop.f32.mrb[0].mxu0
        %v690 = vadd.f32 %v545, %v689
        %v691 = vpop.f32.mrb[0].mxu0
        %692 = vdwg.mxu0
        %693 = vmatprep.subr.mxu0 0.0
        %694 = vmatpush1.msra.mxu0 %v348
        %695 = vmatprep.subr.mxu0 0.0
        %696 = vmatpush1.msra.mxu0 %v349
        %697 = vmatprep.subr.mxu0 0.0
        %698 = vmatpush1.msra.mxu0 %v350
        %699 = vmatprep.subr.mxu0 0.0
        %700 = vmatpush1.msra.mxu0 %v351
        %701 = vmatprep.subr.mxu0 0.0
        %702 = vmatpush1.msra.mxu0 %v352
        %703 = vmatprep.subr.mxu0 0.0
        %704 = vmatpush1.msra.mxu0 %v353
        %705 = vmatprep.subr.mxu0 0.0
        %706 = vmatpush1.msra.mxu0 0.0
        %707 = vmatprep.subr.mxu0 0.0
        %708 = vmatpush1.msra.mxu0 0.0
        %709 = vmatprep.subr.mxu0 0.0
        %710 = vmatpush1.msra.mxu0 0.0
        %711 = vmatprep.subr.mxu0 0.0
        %712 = vmatpush1.msra.mxu0 0.0
        %713 = vmatprep.subr.mxu0 0.0
        %714 = vmatpush1.msra.mxu0 0.0
        %715 = vmatprep.subr.mxu0 0.0
        %716 = vmatpush1.msra.mxu0 0.0
        %717 = vmatprep.subr.mxu0 0.0
        %718 = vmatpush1.msra.mxu0 0.0
        %719 = vmatprep.subr.mxu0 0.0
        %720 = vmatpush1.msra.mxu0 0.0
        %721 = vmatprep.subr.mxu0 0.0
        %722 = vmatpush1.msra.mxu0 0.0
        %723 = vmatprep.subr.mxu0 0.0
        %724 = vmatpush1.msra.mxu0 0.0
        %725 = vmatprep.subr.mxu0 0.0
        %726 = vmatpush1.msra.mxu0 0.0
        %727 = vmatprep.subr.mxu0 0.0
        %728 = vmatpush1.msra.mxu0 0.0
        %729 = vmatprep.subr.mxu0 0.0
        %730 = vmatpush1.msra.mxu0 0.0
        %731 = vmatprep.subr.mxu0 0.0
        %732 = vmatpush1.msra.mxu0 0.0
        %733 = vmatprep.subr.mxu0 0.0
        %734 = vmatpush1.msra.mxu0 0.0
        %735 = vmatprep.subr.mxu0 0.0
        %736 = vmatpush1.msra.mxu0 0.0
        %737 = vmatprep.subr.mxu0 0.0
        %738 = vmatpush1.msra.mxu0 0.0
        %739 = vmatprep.subr.mxu0 0.0
        %740 = vmatpush1.msra.mxu0 0.0
        %741 = vmatprep.subr.mxu0 0.0
        %742 = vmatpush1.msra.mxu0 0.0
        %743 = vmatprep.subr.mxu0 0.0
        %744 = vmatpush1.msra.mxu0 0.0
        %745 = vmatprep.subr.mxu0 0.0
        %746 = vmatpush1.msra.mxu0 0.0
        %747 = vmatprep.subr.mxu0 0.0
        %748 = vmatpush1.msra.mxu0 0.0
        %749 = vmatprep.subr.mxu0 0.0
        %750 = vmatpush1.msra.mxu0 0.0
        %751 = vmatprep.subr.mxu0 0.0
        %752 = vmatpush1.msra.mxu0 0.0
        %753 = vmatprep.subr.mxu0 0.0
        %754 = vmatpush1.msra.mxu0 0.0
        %755 = vmatprep.subr.mxu0 0.0
        %756 = vmatpush1.msra.mxu0 0.0
        %757 = vmatprep.mubr.f32.mxu0 0.0
        %758 = vmatmul.mubr.f32.gmra.mrb[0].mxu0 %v356
        %v759 = vpop.f32.mrb[0].mxu0
        %v760 = vadd.f32 %v615, %v759
        %v761 = vpop.f32.mrb[0].mxu0
        %762 = vmatprep.mubr.f32.mxu0 0.0
        %763 = vmatmul.mubr.f32.gmra.mrb[0].mxu0 %v359
        %v764 = vpop.f32.mrb[0].mxu0
        %v765 = vadd.f32 %v620, %v764
        %v766 = vpop.f32.mrb[0].mxu0
        %767 = vmatprep.mubr.f32.mxu0 0.0
        %768 = vmatmul.mubr.f32.gmra.mrb[0].mxu0 %v362
        %v769 = vpop.f32.mrb[0].mxu0
        %v770 = vadd.f32 %v625, %v769
        %v771 = vpop.f32.mrb[0].mxu0
        %772 = vmatprep.mubr.f32.mxu0 0.0
        %773 = vmatmul.mubr.f32.gmra.mrb[0].mxu0 %v365
        %v774 = vpop.f32.mrb[0].mxu0
        %v775 = vadd.f32 %v630, %v774
        %v776 = vpop.f32.mrb[0].mxu0
        %777 = vmatprep.mubr.f32.mxu0 0.0
        %778 = vmatmul.mubr.f32.gmra.mrb[0].mxu0 %v368
        %v779 = vpop.f32.mrb[0].mxu0
        %v780 = vadd.f32 %v635, %v779
        %v781 = vpop.f32.mrb[0].mxu0
        %782 = vmatprep.mubr.f32.mxu0 0.0
        %783 = vmatmul.mubr.f32.gmra.mrb[0].mxu0 %v371
        %v784 = vpop.f32.mrb[0].mxu0
        %v785 = vadd.f32 %v640, %v784
        %v786 = vpop.f32.mrb[0].mxu0
        %787 = vmatprep.mubr.f32.mxu0 0.0
        %788 = vmatmul.mubr.f32.gmra.mrb[0].mxu0 %v374
        %v789 = vpop.f32.mrb[0].mxu0
        %v790 = vadd.f32 %v645, %v789
        %v791 = vpop.f32.mrb[0].mxu0
        %792 = vmatprep.mubr.f32.mxu0 0.0
        %793 = vmatmul.mubr.f32.gmra.mrb[0].mxu0 %v377
        %v794 = vpop.f32.mrb[0].mxu0
        %v795 = vadd.f32 %v650, %v794
        %v796 = vpop.f32.mrb[0].mxu0
        %797 = vmatprep.mubr.f32.mxu0 0.0
        %798 = vmatmul.mubr.f32.gmra.mrb[0].mxu0 %v380
        %v799 = vpop.f32.mrb[0].mxu0
        %v800 = vadd.f32 %v655, %v799
        %v801 = vpop.f32.mrb[0].mxu0
        %802 = vmatprep.mubr.f32.mxu0 0.0
        %803 = vmatmul.mubr.f32.gmra.mrb[0].mxu0 %v383
        %v804 = vpop.f32.mrb[0].mxu0
        %v805 = vadd.f32 %v660, %v804
        %v806 = vpop.f32.mrb[0].mxu0
        %807 = vmatprep.mubr.f32.mxu0 0.0
        %808 = vmatmul.mubr.f32.gmra.mrb[0].mxu0 %v386
        %v809 = vpop.f32.mrb[0].mxu0
        %v810 = vadd.f32 %v665, %v809
        %v811 = vpop.f32.mrb[0].mxu0
        %812 = vmatprep.mubr.f32.mxu0 0.0
        %813 = vmatmul.mubr.f32.gmra.mrb[0].mxu0 %v389
        %v814 = vpop.f32.mrb[0].mxu0
        %v815 = vadd.f32 %v670, %v814
        %v816 = vpop.f32.mrb[0].mxu0
        %817 = vmatprep.mubr.f32.mxu0 0.0
        %818 = vmatmul.mubr.f32.gmra.mrb[0].mxu0 %v392
        %v819 = vpop.f32.mrb[0].mxu0
        %v820 = vadd.f32 %v675, %v819
        %v821 = vpop.f32.mrb[0].mxu0
        %822 = vmatprep.mubr.f32.mxu0 0.0
        %823 = vmatmul.mubr.f32.gmra.mrb[0].mxu0 %v395
        %v824 = vpop.f32.mrb[0].mxu0
        %v825 = vadd.f32 %v680, %v824
        %v826 = vpop.f32.mrb[0].mxu0
        %827 = vmatprep.mubr.f32.mxu0 0.0
        %828 = vmatmul.mubr.f32.gmra.mrb[0].mxu0 %v398
        %v829 = vpop.f32.mrb[0].mxu0
        %v830 = vadd.f32 %v685, %v829
        %v831 = vpop.f32.mrb[0].mxu0
        %832 = vmatprep.mubr.f32.mxu0 0.0
        %833 = vmatmul.mubr.f32.gmra.mrb[0].mxu0 %v401
        %v834 = vpop.f32.mrb[0].mxu0
        %v835 = vadd.f32 %v690, %v834
        %v836 = vpop.f32.mrb[0].mxu0
        %837 = vdwg.mxu0
        %v838 = vld [vmem:[%s2] sm:$0x1]
        %v840 = vlaneseq
        %v841 = vshrl.u32 %v840, 7
        %v842 = vsub.s32 0, %v841
        %v843 = vrot.slane %v838, %v842
        %v845 = vsub.f32 %v760, %v843
        %v846 = vsub.f32 %v765, %v843
        %v847 = vsub.f32 %v770, %v843
        %v848 = vsub.f32 %v775, %v843
        %v849 = vsub.f32 %v780, %v843
        %v850 = vsub.f32 %v785, %v843
        %v851 = vsub.f32 %v790, %v843
        %v852 = vsub.f32 %v795, %v843
        %v853 = vsub.f32 %v800, %v843
        %v854 = vsub.f32 %v805, %v843
        %v855 = vsub.f32 %v810, %v843
        %v856 = vsub.f32 %v815, %v843
        %v857 = vsub.f32 %v820, %v843
        %v858 = vsub.f32 %v825, %v843
        %v859 = vsub.f32 %v830, %v843
        %v860 = vsub.f32 %v835, %v843
        %v861 = vsub.f32 0.0, %v845
        %v862 = vsub.f32 0.0, %v846
        %v863 = vsub.f32 0.0, %v847
        %v864 = vsub.f32 0.0, %v848
        %v865 = vsub.f32 0.0, %v849
        %v866 = vsub.f32 0.0, %v850
        %v867 = vsub.f32 0.0, %v851
        %v868 = vsub.f32 0.0, %v852
        %v869 = vsub.f32 0.0, %v853
        %v870 = vsub.f32 0.0, %v854
        %v871 = vsub.f32 0.0, %v855
        %v872 = vsub.f32 0.0, %v856
        %v873 = vsub.f32 0.0, %v857
        %v874 = vsub.f32 0.0, %v858
        %v875 = vsub.f32 0.0, %v859
        %v876 = vsub.f32 0.0, %v860
        %v877 = vmul.f32 %v861, 1.442695
        %v878 = vpow.pop %v877
        %v879 = vmul.f32 %v862, 1.442695
        %v880 = vpow.pop %v879
        %v881 = vmul.f32 %v863, 1.442695
        %v882 = vpow.pop %v881
        %v883 = vmul.f32 %v864, 1.442695
        %v884 = vpow.pop %v883
        %v885 = vmul.f32 %v865, 1.442695
        %v886 = vpow.pop %v885
        %v887 = vmul.f32 %v866, 1.442695
        %v888 = vpow.pop %v887
        %v889 = vmul.f32 %v867, 1.442695
        %v890 = vpow.pop %v889
        %v891 = vmul.f32 %v868, 1.442695
        %v892 = vpow.pop %v891
        %v893 = vmul.f32 %v869, 1.442695
        %v894 = vpow.pop %v893
        %v895 = vmul.f32 %v870, 1.442695
        %v896 = vpow.pop %v895
        %v897 = vmul.f32 %v871, 1.442695
        %v898 = vpow.pop %v897
        %v899 = vmul.f32 %v872, 1.442695
        %v900 = vpow.pop %v899
        %v901 = vmul.f32 %v873, 1.442695
        %v902 = vpow.pop %v901
        %v903 = vmul.f32 %v874, 1.442695
        %v904 = vpow.pop %v903
        %v905 = vmul.f32 %v875, 1.442695
        %v906 = vpow.pop %v905
        %v907 = vmul.f32 %v876, 1.442695
        %v908 = vpow.pop %v907
        %v909 = vadd.f32 %v878, 1.0
        %v910 = vadd.f32 %v880, 1.0
        %v911 = vadd.f32 %v882, 1.0
        %v912 = vadd.f32 %v884, 1.0
        %v913 = vadd.f32 %v886, 1.0
        %v914 = vadd.f32 %v888, 1.0
        %v915 = vadd.f32 %v890, 1.0
        %v916 = vadd.f32 %v892, 1.0
        %v917 = vadd.f32 %v894, 1.0
        %v918 = vadd.f32 %v896, 1.0
        %v919 = vadd.f32 %v898, 1.0
        %v920 = vadd.f32 %v900, 1.0
        %v921 = vadd.f32 %v902, 1.0
        %v922 = vadd.f32 %v904, 1.0
        %v923 = vadd.f32 %v906, 1.0
        %v924 = vadd.f32 %v908, 1.0
        %v925 = vrcp.pop %v909
        %v926 = vmul.f32 1.0, %v925
        %v927 = vrcp.pop %v910
        %v928 = vmul.f32 1.0, %v927
        %v929 = vrcp.pop %v911
        %v930 = vmul.f32 1.0, %v929
        %v931 = vrcp.pop %v912
        %v932 = vmul.f32 1.0, %v931
        %v933 = vrcp.pop %v913
        %v934 = vmul.f32 1.0, %v933
        %v935 = vrcp.pop %v914
        %v936 = vmul.f32 1.0, %v935
        %v937 = vrcp.pop %v915
        %v938 = vmul.f32 1.0, %v937
        %v939 = vrcp.pop %v916
        %v940 = vmul.f32 1.0, %v939
        %v941 = vrcp.pop %v917
        %v942 = vmul.f32 1.0, %v941
        %v943 = vrcp.pop %v918
        %v944 = vmul.f32 1.0, %v943
        %v945 = vrcp.pop %v919
        %v946 = vmul.f32 1.0, %v945
        %v947 = vrcp.pop %v920
        %v948 = vmul.f32 1.0, %v947
        %v949 = vrcp.pop %v921
        %v950 = vmul.f32 1.0, %v949
        %v951 = vrcp.pop %v922
        %v952 = vmul.f32 1.0, %v951
        %v953 = vrcp.pop %v923
        %v954 = vmul.f32 1.0, %v953
        %v955 = vrcp.pop %v924
        %v956 = vmul.f32 1.0, %v955
        %vm957 = vcmask 31744
        %958 = vst.msk [vmem:[%s192] sm:$0xff] %vm957, %v926
        %959 = vst.msk [vmem:[%s192 + $0x8] sm:$0xff] %vm957, %v928
        %960 = vst.msk [vmem:[%s192 + $0x10] sm:$0xff] %vm957, %v930
        %961 = vst.msk [vmem:[%s192 + $0x18] sm:$0xff] %vm957, %v932
        %962 = vst.msk [vmem:[%s192 + $0x20] sm:$0xff] %vm957, %v934
        %963 = vst.msk [vmem:[%s192 + $0x28] sm:$0xff] %vm957, %v936
        %964 = vst.msk [vmem:[%s192 + $0x30] sm:$0xff] %vm957, %v938
        %965 = vst.msk [vmem:[%s192 + $0x38] sm:$0xff] %vm957, %v940
        %966 = vst.msk [vmem:[%s192 + $0x40] sm:$0xff] %vm957, %v942
        %967 = vst.msk [vmem:[%s192 + $0x48] sm:$0xff] %vm957, %v944
        %968 = vst.msk [vmem:[%s192 + $0x50] sm:$0xff] %vm957, %v946
        %969 = vst.msk [vmem:[%s192 + $0x58] sm:$0xff] %vm957, %v948
        %970 = vst.msk [vmem:[%s192 + $0x60] sm:$0xff] %vm957, %v950
        %971 = vst.msk [vmem:[%s192 + $0x68] sm:$0xff] %vm957, %v952
        %972 = vst.msk [vmem:[%s192 + $0x70] sm:$0xff] %vm957, %v954
        %973 = vst.msk [vmem:[%s192 + $0x78] sm:$0xff] %vm957, %v956
        %s974 = sand.u32 %s93, 1
        %s975 = sand.u32 %s93, 1
        %s976 = smul.addr %s975, 128
        %s977 = scalar_lea.vmem [#allocation4], %s976
        // Predicated region
        $region37: #{tpu_custom_call.1} parent=31 // pred_check
          %p978 = pneg %p103
        $region38: #{tpu_custom_call.1} parent=31 // pred_check_branch
          %980 = sbr.rel (%p978) target = $region40
        $region39: #{tpu_custom_call.1} parent=31 // pred_region
          %s981 = smul.u32 16, %s17
          %s982 = ssub.s32 25, %s981
          %p983 = scmp.lt.s32.totalorder %s982, 16
          %s984 = scalar_select %p983, %s982, 16
          %s985 = smul.u32 128, %s984
          %p986 = scmp.ne.s32.totalorder 0, %s985
          %s987 = smul.addr %s981, 8
          %s988 = scalar_lea.vmem %s3, %s987
          // Predicated region
          $region41: #{tpu_custom_call.1} parent=39 // pred_check
            %p989 = pneg %p986
          $region42: #{tpu_custom_call.1} parent=39 // pred_check_branch
            %991 = sbr.rel (%p989) target = $region44
          $region43: #{tpu_custom_call.1} parent=39 // pred_region
            // Predicated region
            $region45: #{tpu_custom_call.1} parent=43 // pred_check
              _
            $region46: #{tpu_custom_call.1} parent=43 // pred_check_branch
              %993 = sbr.rel (0) target = $region48
            $region47: #{tpu_custom_call.1} parent=43 // pred_region
              // Predicated region
              $region67: #{tpu_custom_call.1} parent=47 // pred_check
                _
              $region68: #{tpu_custom_call.1} parent=47 // pred_check_branch
                %1072 = sbr.rel (0) target = $region70
              $region69: #{tpu_custom_call.1} parent=47 // pred_region
                %s1073 = sshrl.u32 %s984, 4
                // While loop
                $region71: #{tpu_custom_call.1} parent=69 // loop_pre_header
                  _
                $region72: #{tpu_custom_call.1} parent=69 // loop_header
                  %s1075 = sphi 0, %s1077
                  %p1076 = scmp.ge.s32.totalorder %s1075, %s1073
                  %s1080 = sphi 0, %s1117
                  %s1081 = sphi %s977, %s1120
                  %s1082 = sphi %s988, %s1121
                $region73: #{tpu_custom_call.1} parent=69 // loop_header_branch
                  %1079 = sbr.rel (%p1076) target = $region77
                $region74: #{tpu_custom_call.1} parent=69 // loop_body
                  %v1083 = vld [vmem:[%s1081] sm:$0xff]
                  %1084 = vst [vmem:[%s1082] sm:$0xff] %v1083
                  %v1085 = vld [vmem:[%s1081 + $0x8] sm:$0xff]
                  %1086 = vst [vmem:[%s1082 + $0x8] sm:$0xff] %v1085
                  %v1087 = vld [vmem:[%s1081 + $0x10] sm:$0xff]
                  %1088 = vst [vmem:[%s1082 + $0x10] sm:$0xff] %v1087
                  %v1089 = vld [vmem:[%s1081 + $0x18] sm:$0xff]
                  %1090 = vst [vmem:[%s1082 + $0x18] sm:$0xff] %v1089
                  %v1091 = vld [vmem:[%s1081 + $0x20] sm:$0xff]
                  %1092 = vst [vmem:[%s1082 + $0x20] sm:$0xff] %v1091
                  %v1093 = vld [vmem:[%s1081 + $0x28] sm:$0xff]
                  %1094 = vst [vmem:[%s1082 + $0x28] sm:$0xff] %v1093
                  %v1095 = vld [vmem:[%s1081 + $0x30] sm:$0xff]
                  %1096 = vst [vmem:[%s1082 + $0x30] sm:$0xff] %v1095
                  %v1097 = vld [vmem:[%s1081 + $0x38] sm:$0xff]
                  %1098 = vst [vmem:[%s1082 + $0x38] sm:$0xff] %v1097
                  %v1099 = vld [vmem:[%s1081 + $0x40] sm:$0xff]
                  %1100 = vst [vmem:[%s1082 + $0x40] sm:$0xff] %v1099
                  %v1101 = vld [vmem:[%s1081 + $0x48] sm:$0xff]
                  %1102 = vst [vmem:[%s1082 + $0x48] sm:$0xff] %v1101
                  %v1103 = vld [vmem:[%s1081 + $0x50] sm:$0xff]
                  %1104 = vst [vmem:[%s1082 + $0x50] sm:$0xff] %v1103
                  %v1105 = vld [vmem:[%s1081 + $0x58] sm:$0xff]
                  %1106 = vst [vmem:[%s1082 + $0x58] sm:$0xff] %v1105
                  %v1107 = vld [vmem:[%s1081 + $0x60] sm:$0xff]
                  %1108 = vst [vmem:[%s1082 + $0x60] sm:$0xff] %v1107
                  %v1109 = vld [vmem:[%s1081 + $0x68] sm:$0xff]
                  %1110 = vst [vmem:[%s1082 + $0x68] sm:$0xff] %v1109
                  %v1111 = vld [vmem:[%s1081 + $0x70] sm:$0xff]
                  %1112 = vst [vmem:[%s1082 + $0x70] sm:$0xff] %v1111
                  %v1113 = vld [vmem:[%s1081 + $0x78] sm:$0xff]
                  %1114 = vst [vmem:[%s1082 + $0x78] sm:$0xff] %v1113
                  %s1115 = sadd.s32 1, %s1080
                  %p1116 = scmp.ge.s32.totalorder %s1115, %s1073
                  %s1117 = scalar_select %p1116, 0, %s1115
                  %s1118 = smul.u32 %s1117, 128
                  %s1119 = smul.u32 %s1117, 128
                  %s1120 = scalar_lea.vmem %s977, %s1118 [#allocation4]
                  %s1121 = scalar_lea.vmem %s988, %s1119
                $region75: #{tpu_custom_call.1} parent=69 // loop_footer
                  %s1077 = sadd.s32 %s1075, 1
                $region76: #{tpu_custom_call.1} parent=69 // loop_footer_branch
                  %1074 = sbr.rel target = $region72
                $region77: #{tpu_custom_call.1} parent=69 // loop_exit
                  _
                %s1122 = sshrl.u32 %s984, 4
                %s1123 = sand.u32 %s984, 15
                %s1124 = smul.u32 %s1122, 16
                %s1125 = smul.u32 8, %s1124
                %s1126 = scalar_lea.vmem %s977, %s1125 [#allocation4]
                %s1127 = smul.u32 8, %s1124
                %s1128 = scalar_lea.vmem %s988, %s1127
                // While loop
                $region78: #{tpu_custom_call.1} parent=69 // loop_pre_header
                  _
                $region79: #{tpu_custom_call.1} parent=69 // loop_header
                  %s1130 = sphi 0, %s1132
                  %p1131 = scmp.ge.s32.totalorder %s1130, %s1123
                  %s1135 = sphi 0, %s1142
                  %s1136 = sphi %s1126, %s1145
                  %s1137 = sphi %s1128, %s1146
                $region80: #{tpu_custom_call.1} parent=69 // loop_header_branch
                  %1134 = sbr.rel (%p1131) target = $region84
                $region81: #{tpu_custom_call.1} parent=69 // loop_body
                  %v1138 = vld [vmem:[%s1136] sm:$0xff]
                  %1139 = vst [vmem:[%s1137] sm:$0xff] %v1138
                  %s1140 = sadd.s32 1, %s1135
                  %p1141 = scmp.ge.s32.totalorder %s1140, %s1123
                  %s1142 = scalar_select %p1141, 0, %s1140
                  %s1143 = smul.u32 %s1142, 8
                  %s1144 = smul.u32 %s1142, 8
                  %s1145 = scalar_lea.vmem %s1126, %s1143 [#allocation4]
                  %s1146 = scalar_lea.vmem %s1128, %s1144
                $region82: #{tpu_custom_call.1} parent=69 // loop_footer
                  %s1132 = sadd.s32 %s1130, 1
                $region83: #{tpu_custom_call.1} parent=69 // loop_footer_branch
                  %1129 = sbr.rel target = $region79
                $region84: #{tpu_custom_call.1} parent=69 // loop_exit
                  _
              $region70: #{tpu_custom_call.1} parent=47 // pred_fallthru
                _
              // Predicated region
              $region85: #{tpu_custom_call.1} parent=47 // pred_check
                _
              $region86: #{tpu_custom_call.1} parent=47 // pred_check_branch
                %1148 = sbr.rel target = $region88
              $region87: #{tpu_custom_call.1} parent=47 // pred_region
                _
              $region88: #{tpu_custom_call.1} parent=47 // pred_fallthru
                _
            $region48: #{tpu_custom_call.1} parent=43 // pred_fallthru
              _
            // Predicated region
            $region49: #{tpu_custom_call.1} parent=43 // pred_check
              _
            $region50: #{tpu_custom_call.1} parent=43 // pred_check_branch
              %995 = sbr.rel target = $region52
            $region51: #{tpu_custom_call.1} parent=43 // pred_region
              %s997 = sshrl.u32 %s984, 4
              // While loop
              $region53: #{tpu_custom_call.1} parent=51 // loop_pre_header
                _
              $region54: #{tpu_custom_call.1} parent=51 // loop_header
                %s999 = sphi 0, %s1001
                %p1000 = scmp.ge.s32.totalorder %s999, %s997
                %s1004 = sphi 0, %s1041
                %s1005 = sphi %s977, %s1044
                %s1006 = sphi %s988, %s1045
              $region55: #{tpu_custom_call.1} parent=51 // loop_header_branch
                %1003 = sbr.rel (%p1000) target = $region59
              $region56: #{tpu_custom_call.1} parent=51 // loop_body
                %v1007 = vld [vmem:[%s1005] sm:$0xff]
                %1008 = vst [vmem:[%s1006] sm:$0xff] %v1007
                %v1009 = vld [vmem:[%s1005 + $0x8] sm:$0xff]
                %1010 = vst [vmem:[%s1006 + $0x8] sm:$0xff] %v1009
                %v1011 = vld [vmem:[%s1005 + $0x10] sm:$0xff]
                %1012 = vst [vmem:[%s1006 + $0x10] sm:$0xff] %v1011
                %v1013 = vld [vmem:[%s1005 + $0x18] sm:$0xff]
                %1014 = vst [vmem:[%s1006 + $0x18] sm:$0xff] %v1013
                %v1015 = vld [vmem:[%s1005 + $0x20] sm:$0xff]
                %1016 = vst [vmem:[%s1006 + $0x20] sm:$0xff] %v1015
                %v1017 = vld [vmem:[%s1005 + $0x28] sm:$0xff]
                %1018 = vst [vmem:[%s1006 + $0x28] sm:$0xff] %v1017
                %v1019 = vld [vmem:[%s1005 + $0x30] sm:$0xff]
                %1020 = vst [vmem:[%s1006 + $0x30] sm:$0xff] %v1019
                %v1021 = vld [vmem:[%s1005 + $0x38] sm:$0xff]
                %1022 = vst [vmem:[%s1006 + $0x38] sm:$0xff] %v1021
                %v1023 = vld [vmem:[%s1005 + $0x40] sm:$0xff]
                %1024 = vst [vmem:[%s1006 + $0x40] sm:$0xff] %v1023
                %v1025 = vld [vmem:[%s1005 + $0x48] sm:$0xff]
                %1026 = vst [vmem:[%s1006 + $0x48] sm:$0xff] %v1025
                %v1027 = vld [vmem:[%s1005 + $0x50] sm:$0xff]
                %1028 = vst [vmem:[%s1006 + $0x50] sm:$0xff] %v1027
                %v1029 = vld [vmem:[%s1005 + $0x58] sm:$0xff]
                %1030 = vst [vmem:[%s1006 + $0x58] sm:$0xff] %v1029
                %v1031 = vld [vmem:[%s1005 + $0x60] sm:$0xff]
                %1032 = vst [vmem:[%s1006 + $0x60] sm:$0xff] %v1031
                %v1033 = vld [vmem:[%s1005 + $0x68] sm:$0xff]
                %1034 = vst [vmem:[%s1006 + $0x68] sm:$0xff] %v1033
                %v1035 = vld [vmem:[%s1005 + $0x70] sm:$0xff]
                %1036 = vst [vmem:[%s1006 + $0x70] sm:$0xff] %v1035
                %v1037 = vld [vmem:[%s1005 + $0x78] sm:$0xff]
                %1038 = vst [vmem:[%s1006 + $0x78] sm:$0xff] %v1037
                %s1039 = sadd.s32 1, %s1004
                %p1040 = scmp.ge.s32.totalorder %s1039, %s997
                %s1041 = scalar_select %p1040, 0, %s1039
                %s1042 = smul.u32 %s1041, 128
                %s1043 = smul.u32 %s1041, 128
                %s1044 = scalar_lea.vmem %s977, %s1042 [#allocation4]
                %s1045 = scalar_lea.vmem %s988, %s1043
              $region57: #{tpu_custom_call.1} parent=51 // loop_footer
                %s1001 = sadd.s32 %s999, 1
              $region58: #{tpu_custom_call.1} parent=51 // loop_footer_branch
                %998 = sbr.rel target = $region54
              $region59: #{tpu_custom_call.1} parent=51 // loop_exit
                _
              %s1046 = sshrl.u32 %s984, 4
              %s1047 = sand.u32 %s984, 15
              %s1048 = smul.u32 %s1046, 16
              %s1049 = smul.u32 8, %s1048
              %s1050 = scalar_lea.vmem %s977, %s1049 [#allocation4]
              %s1051 = smul.u32 8, %s1048
              %s1052 = scalar_lea.vmem %s988, %s1051
              // While loop
              $region60: #{tpu_custom_call.1} parent=51 // loop_pre_header
                _
              $region61: #{tpu_custom_call.1} parent=51 // loop_header
                %s1054 = sphi 0, %s1056
                %p1055 = scmp.ge.s32.totalorder %s1054, %s1047
                %s1059 = sphi 0, %s1066
                %s1060 = sphi %s1050, %s1069
                %s1061 = sphi %s1052, %s1070
              $region62: #{tpu_custom_call.1} parent=51 // loop_header_branch
                %1058 = sbr.rel (%p1055) target = $region66
              $region63: #{tpu_custom_call.1} parent=51 // loop_body
                %v1062 = vld [vmem:[%s1060] sm:$0xff]
                %1063 = vst [vmem:[%s1061] sm:$0xff] %v1062
                %s1064 = sadd.s32 1, %s1059
                %p1065 = scmp.ge.s32.totalorder %s1064, %s1047
                %s1066 = scalar_select %p1065, 0, %s1064
                %s1067 = smul.u32 %s1066, 8
                %s1068 = smul.u32 %s1066, 8
                %s1069 = scalar_lea.vmem %s1050, %s1067 [#allocation4]
                %s1070 = scalar_lea.vmem %s1052, %s1068
              $region64: #{tpu_custom_call.1} parent=51 // loop_footer
                %s1056 = sadd.s32 %s1054, 1
              $region65: #{tpu_custom_call.1} parent=51 // loop_footer_branch
                %1053 = sbr.rel target = $region61
              $region66: #{tpu_custom_call.1} parent=51 // loop_exit
                _
            $region52: #{tpu_custom_call.1} parent=43 // pred_fallthru
              _
          $region44: #{tpu_custom_call.1} parent=39 // pred_fallthru
            _
          %1149 = vnop
        $region40: #{tpu_custom_call.1} parent=31 // pred_fallthru
          _
      $region32: #{tpu_custom_call.1} parent=5 // pred_fallthru
        _
      %p1150 = scmp.le.s32.totalorder 2, %s12
      // Predicated region
      $region89: #{tpu_custom_call.1} parent=5 // pred_check
        %p1151 = pneg %p1150
      $region90: #{tpu_custom_call.1} parent=5 // pred_check_branch
        %1153 = sbr.rel (%p1151) target = $region92
      $region91: #{tpu_custom_call.1} parent=5 // pred_region
        %s1154 = ssub.s32 %s12, 2
        // Predicated region
        $region93: #{tpu_custom_call.1} parent=91 // pred_check
          %p1155 = pneg %p109
        $region94: #{tpu_custom_call.1} parent=91 // pred_check_branch
          %1157 = sbr.rel (%p1155) target = $region96
        $region95: #{tpu_custom_call.1} parent=91 // pred_region
          %s1158 = sand.u32 %s94, 1
          %s1159 = sand.u32 %s94, 1
          %s1160 = smul.addr %s1159, 128
          %s1161 = scalar_lea.vmem [#allocation4], %s1160
        $region96: #{tpu_custom_call.1} parent=91 // pred_fallthru
          _
      $region92: #{tpu_custom_call.1} parent=5 // pred_fallthru
        _
    $region6: #{tpu_custom_call.1} parent=1 // loop_footer
      %s16 = sadd.s32 1, %s12
    $region7: #{tpu_custom_call.1} parent=1 // loop_footer_branch
      %11 = sbr.rel target = $region3
    $region8: #{tpu_custom_call.1} parent=1 // loop_exit
      _
    %1162 = vsyncpa [#allocation3], 1
    %s1163 = scalar_lea.sflag [#allocation3], 1
    %1164 = vsyncpa %s1163, 1

</llo_original>
